<compile_context>
chip_gen: v7x
topology: tpu7x:2x2x1
jax: 0.10.0
libtpu: 0.0.40
codegen_flags: <defaults>
</compile_context>

<pallas_src>
import functools

import jax
import jax.numpy as jnp
from jax.experimental import pallas as pl
from jax.experimental.pallas import tpu as pltpu

POOL_SIZES = (5, 9, 13)   # as in the PyTorch module's __init__
_MiB = 1024 * 1024
_LANE = 128


def _spp_kernel(x_ref, o_ref, *, H, W, nfeat):
    """x_ref: (c_tile, H*W) input tile, spatial flattened on the lane axis.
    o_ref: (nfeat, c_tile, H*W) feature slabs [pool13, pool9, pool5 (, x)]."""
    hw = H * W
    x = x_ref[...]
    dt = x.dtype
    zero = jnp.zeros((), dt)
    ninf = jnp.full((), -jnp.inf, dt)

    # Hoisted -inf edge biases, one per (axis, shift); computed once per tile and
    # reused by all three cascaded pools (broadcast over the channel sublane dim).
    j = jax.lax.broadcasted_iota(jnp.int32, (1, hw), 1)
    col = j % W
    plan = []                                   # [[(roll_amount, bias), ...], ...]
    for step, pos, lim in ((1, col, W), (W, j, hw)):       # W pass, then H pass
        axis_plan = []
        for d in (1, 2, -1, -2):                # shifted read y[j + d*step]
            if d > 0:
                valid = pos < lim - d * step
            else:
                valid = pos >= (-d) * step
            axis_plan.append((((-d) * step) % hw, jnp.where(valid, zero, ninf)))
        plan.append(axis_plan)

    def pool5(y):
        # k=5, stride-1, 'same' (-inf padded) max pool, separable over W then H.
        # Each pass = 4 static lane rolls (XLU slot) + masked maxes (VPU slot).
        for axis_plan in plan:
            acc = y
            for amount, bias in axis_plan:
                acc = jnp.maximum(acc, pltpu.roll(y, amount, axis=1) + bias)
            y = acc
        return y

    y1 = pool5(x)       # == MaxPool2d(5, 1, 2)(x)
    y2 = pool5(y1)      # == MaxPool2d(9, 1, 4)(x)   (SPPF cascade, exact)
    y3 = pool5(y2)      # == MaxPool2d(13, 1, 6)(x)
    o_ref[0] = y3
    o_ref[1] = y2
    o_ref[2] = y1
    if nfeat == 4:
        o_ref[3] = x    # identity feature: one extra write beats a caller concat


def _pick_tiling(N, C, H, W, dtype, nfeat):
    """Channel tile + VMEM limit, generation-aware (64 MiB v7x / 128 MiB v5e,v6e)."""
    itemsize = jnp.dtype(dtype).itemsize
    try:
        cap = getattr(pltpu.get_tpu_info(), "vmem_capacity_bytes", None) or 64 * _MiB
    except Exception:
        cap = 64 * _MiB
    # 40 MiB limit on 64-MiB parts, 96 MiB on 128-MiB parts; always leave headroom.
    vmem_limit = max(16 * _MiB, min(cap - 24 * _MiB, (3 * cap) // 4))
    budget = max(4 * _MiB, vmem_limit - 8 * _MiB)   # headroom for compiler scratch

    hw_pad = pl.cdiv(H * W, _LANE) * _LANE          # lane-padded VMEM footprint
    sub = max(8, 8 * (4 // itemsize))               # sublane quantum: f32->8, bf16->16

    def vmem_cost(ct):
        blk = pl.cdiv(ct, sub) * sub * hw_pad * itemsize
        # 2x double-buffered (1 input + nfeat output) pipeline blocks + ~6 live temps.
        return (2 * (1 + nfeat) + 6) * blk

    # Legal channel tiles: divisors of C that are sublane multiples, plus full C.
    cands = sorted({c for c in range(sub, C + 1, sub) if C % c == 0} | {C},
                   reverse=True)
    fits = [c for c in cands if vmem_cost(c) <= budget] or [cands[-1]]
    c_tile = fits[0]
    for c in fits:                                  # prefer >= 4 grid steps
        if N * (C // c) >= 4:                       # (pipelining + v7x's 2 TCs)
            c_tile = c
            break
    return c_tile, int(vmem_limit)


@functools.partial(jax.jit, static_argnames=("include_identity",))
def spatial_pyramid_pooling(x, include_identity=True):
    """x: (N, C, H, W) float -> (N, 4C, H, W) = cat([pool13, pool9, pool5, x], dim=1).

    include_identity=False omits the identity slab (returns (N, 3C, H, W)) for
    callers that concatenate / fuse x themselves.
    """
    if not jnp.issubdtype(x.dtype, jnp.floating):
        raise TypeError(f"SPP max-pool kernel requires a floating dtype, got {x.dtype}")
    N, C, H, W = x.shape
    hw = H * W
    nfeat = 4 if include_identity else 3
    itemsize = jnp.dtype(x.dtype).itemsize

    # NCHW-native: flattening (H, W) -> H*W is a contiguous-dim merge, i.e. a
    # metadata-only reshape. No transpose / layout pass on either side.
    x_flat = x.reshape(N, C, hw)

    c_tile, vmem_limit = _pick_tiling(N, C, H, W, x.dtype, nfeat)
    grid = (N, C // c_tile)

    kernel = functools.partial(_spp_kernel, H=H, W=W, nfeat=nfeat)
    cost = pl.CostEstimate(                       # memory bound: 1 read, nfeat writes
        flops=48 * N * C * hw,
        transcendentals=0,
        bytes_accessed=(1 + nfeat) * N * C * hw * itemsize,
    )

    feats = pl.pallas_call(
        kernel,
        out_shape=jax.ShapeDtypeStruct((N, nfeat, C, hw), x.dtype),
        grid=grid,
        in_specs=[pl.BlockSpec((None, c_tile, hw), lambda n, c: (n, c, 0))],
        out_specs=pl.BlockSpec((None, nfeat, c_tile, hw),
                               lambda n, c: (n, 0, c, 0)),
        compiler_params=pltpu.CompilerParams(
            dimension_semantics=("parallel", "parallel"),
            vmem_limit_bytes=vmem_limit,
        ),
        cost_estimate=cost,
    )(x_flat)

    # (N, nfeat, C, H*W) -> (N, nfeat*C, H, W): adjacent-dim merge + split, i.e. a
    # free (metadata-only) reshape -- the channel concat costs no HBM traffic.
    return feats.reshape(N, nfeat * C, H, W)


def ref_spp(x):
    """Pure-JAX reference (lax.reduce_window) for correctness checking."""
    feats = []
    for k in POOL_SIZES[::-1]:
        p = k // 2
        feats.append(
            jax.lax.reduce_window(
                x, -jnp.inf, jax.lax.max,
                (1, 1, k, k), (1, 1, 1, 1),
                [(0, 0), (0, 0), (p, p), (p, p)],
            )
        )
    feats.append(x)
    return jnp.concatenate(feats, axis=1)


if __name__ == "__main__":
    k0, k1 = jax.random.split(jax.random.PRNGKey(0))

    # Small shape from the module spec: (N, C, H, W) = (2, 4, 16, 16).
    x = jax.random.normal(k0, (2, 4, 16, 16), dtype=jnp.float32)
    out = jax.block_until_ready(spatial_pyramid_pooling(x))
    assert out.shape == (2, 16, 16, 16), out.shape
    ref = jax.block_until_ready(ref_spp(x))
    assert jnp.allclose(out, ref), "mismatch vs reference (small shape)"

    # Also exercise the tiled multi-step-grid path (C split into sublane tiles).
    x2 = jax.random.normal(k1, (1, 256, 16, 8), dtype=jnp.float32)
    out2 = jax.block_until_ready(spatial_pyramid_pooling(x2))
    assert out2.shape == (1, 1024, 16, 8), out2.shape
    ref2 = jax.block_until_ready(ref_spp(x2))
    assert jnp.allclose(out2, ref2), "mismatch vs reference (tiled path)"

    print("KERNEL_OK")
</pallas_src>

<mosaic_0001>
module attributes {stable_mosaic.version = 11 : i64} {
  func.func @_spp_kernel(%arg0: i32, %arg1: i32, %arg2: memref<1x4x256xf32, #tpu.memory_space<vmem>>, %arg3: memref<1x4x4x256xf32, #tpu.memory_space<vmem>>) attributes {dimension_semantics = [#tpu.dimension_semantics<parallel>, #tpu.dimension_semantics<parallel>], iteration_bounds = array<i64: 2, 1>, scalar_prefetch = 0 : i64, scratch_operands = 0 : i64, tpu.core_type = #tpu.core_type<tc>, window_params = [{transform_indices = @transform_0, window_bounds = array<i64: 1, 4, 256>}, {transform_indices = @transform_1, window_bounds = array<i64: 1, 4, 4, 256>}]} {
    %c0 = arith.constant 0 : index
    %c0_0 = arith.constant 0 : index
    %c0_1 = arith.constant 0 : index
    %0 = vector.load %arg2[%c0, %c0_0, %c0_1] : memref<1x4x256xf32, #tpu.memory_space<vmem>>, vector<1x4x256xf32>
    %1 = vector.shape_cast %0 : vector<1x4x256xf32> to vector<4x256xf32>
    %2 = tpu.iota {dimensions = array<i32: 1>} : vector<1x256xi32>
    %c16_i32 = arith.constant 16 : i32
    %c0_i32 = arith.constant 0 : i32
    %3 = arith.cmpi eq, %c16_i32, %c0_i32 : i32
    %c1_i32 = arith.constant 1 : i32
    %4 = arith.select %3, %c1_i32, %c16_i32 : i32
    %5 = vector.broadcast %4 : i32 to vector<1x256xi32>
    %6 = arith.remsi %2, %5 : vector<1x256xi32>
    %c0_i32_2 = arith.constant 0 : i32
    %7 = vector.broadcast %c0_i32_2 : i32 to vector<1x256xi32>
    %8 = arith.cmpi ne, %6, %7 : vector<1x256xi32>
    %c0_i32_3 = arith.constant 0 : i32
    %9 = vector.broadcast %c0_i32_3 : i32 to vector<1x256xi32>
    %10 = arith.cmpi slt, %6, %9 : vector<1x256xi32>
    %c0_i32_4 = arith.constant 0 : i32
    %11 = arith.cmpi slt, %4, %c0_i32_4 : i32
    %12 = vector.broadcast %11 : i1 to vector<1x256xi1>
    %13 = vector.broadcast %12 : vector<1x256xi1> to vector<1x256xi1>
    %14 = arith.xori %10, %13 : vector<1x256xi1>
    %15 = arith.andi %14, %8 : vector<1x256xi1>
    %16 = vector.broadcast %4 : i32 to vector<1x256xi32>
    %17 = arith.addi %6, %16 : vector<1x256xi32>
    %18 = arith.select %15, %17, %6 : vector<1x256xi1>, vector<1x256xi32>
    %c15_i32 = arith.constant 15 : i32
    %19 = vector.broadcast %c15_i32 : i32 to vector<1x256xi32>
    %20 = arith.cmpi slt, %18, %19 : vector<1x256xi32>
    %cst = arith.constant 0.000000e+00 : f32
    %cst_5 = arith.constant 0xFF800000 : f32
    %21 = vector.broadcast %cst : f32 to vector<1x256xf32>
    %22 = vector.broadcast %cst_5 : f32 to vector<1x256xf32>
    %23 = arith.select %20, %21, %22 : vector<1x256xi1>, vector<1x256xf32>
    %c14_i32 = arith.constant 14 : i32
    %24 = vector.broadcast %c14_i32 : i32 to vector<1x256xi32>
    %25 = arith.cmpi slt, %18, %24 : vector<1x256xi32>
    %cst_6 = arith.constant 0.000000e+00 : f32
    %cst_7 = arith.constant 0xFF800000 : f32
    %26 = vector.broadcast %cst_6 : f32 to vector<1x256xf32>
    %27 = vector.broadcast %cst_7 : f32 to vector<1x256xf32>
    %28 = arith.select %25, %26, %27 : vector<1x256xi1>, vector<1x256xf32>
    %c1_i32_8 = arith.constant 1 : i32
    %29 = vector.broadcast %c1_i32_8 : i32 to vector<1x256xi32>
    %30 = arith.cmpi sge, %18, %29 : vector<1x256xi32>
    %cst_9 = arith.constant 0.000000e+00 : f32
    %cst_10 = arith.constant 0xFF800000 : f32
    %31 = vector.broadcast %cst_9 : f32 to vector<1x256xf32>
    %32 = vector.broadcast %cst_10 : f32 to vector<1x256xf32>
    %33 = arith.select %30, %31, %32 : vector<1x256xi1>, vector<1x256xf32>
    %c2_i32 = arith.constant 2 : i32
    %34 = vector.broadcast %c2_i32 : i32 to vector<1x256xi32>
    %35 = arith.cmpi sge, %18, %34 : vector<1x256xi32>
    %cst_11 = arith.constant 0.000000e+00 : f32
    %cst_12 = arith.constant 0xFF800000 : f32
    %36 = vector.broadcast %cst_11 : f32 to vector<1x256xf32>
    %37 = vector.broadcast %cst_12 : f32 to vector<1x256xf32>
    %38 = arith.select %35, %36, %37 : vector<1x256xi1>, vector<1x256xf32>
    %c240_i32 = arith.constant 240 : i32
    %39 = vector.broadcast %c240_i32 : i32 to vector<1x256xi32>
    %40 = arith.cmpi slt, %2, %39 : vector<1x256xi32>
    %cst_13 = arith.constant 0.000000e+00 : f32
    %cst_14 = arith.constant 0xFF800000 : f32
    %41 = vector.broadcast %cst_13 : f32 to vector<1x256xf32>
    %42 = vector.broadcast %cst_14 : f32 to vector<1x256xf32>
    %43 = arith.select %40, %41, %42 : vector<1x256xi1>, vector<1x256xf32>
    %c224_i32 = arith.constant 224 : i32
    %44 = vector.broadcast %c224_i32 : i32 to vector<1x256xi32>
    %45 = arith.cmpi slt, %2, %44 : vector<1x256xi32>
    %cst_15 = arith.constant 0.000000e+00 : f32
    %cst_16 = arith.constant 0xFF800000 : f32
    %46 = vector.broadcast %cst_15 : f32 to vector<1x256xf32>
    %47 = vector.broadcast %cst_16 : f32 to vector<1x256xf32>
    %48 = arith.select %45, %46, %47 : vector<1x256xi1>, vector<1x256xf32>
    %c16_i32_17 = arith.constant 16 : i32
    %49 = vector.broadcast %c16_i32_17 : i32 to vector<1x256xi32>
    %50 = arith.cmpi sge, %2, %49 : vector<1x256xi32>
    %cst_18 = arith.constant 0.000000e+00 : f32
    %cst_19 = arith.constant 0xFF800000 : f32
    %51 = vector.broadcast %cst_18 : f32 to vector<1x256xf32>
    %52 = vector.broadcast %cst_19 : f32 to vector<1x256xf32>
    %53 = arith.select %50, %51, %52 : vector<1x256xi1>, vector<1x256xf32>
    %c32_i32 = arith.constant 32 : i32
    %54 = vector.broadcast %c32_i32 : i32 to vector<1x256xi32>
    %55 = arith.cmpi sge, %2, %54 : vector<1x256xi32>
    %cst_20 = arith.constant 0.000000e+00 : f32
    %cst_21 = arith.constant 0xFF800000 : f32
    %56 = vector.broadcast %cst_20 : f32 to vector<1x256xf32>
    %57 = vector.broadcast %cst_21 : f32 to vector<1x256xf32>
    %58 = arith.select %55, %56, %57 : vector<1x256xi1>, vector<1x256xf32>
    %c255_i32 = arith.constant 255 : i32
    %59 = tpu.dynamic_rotate %1 by %c255_i32 dim 1 : vector<4x256xf32>, i32 -> vector<4x256xf32>
    %60 = vector.broadcast %23 : vector<1x256xf32> to vector<4x256xf32>
    %61 = arith.addf %59, %60 : vector<4x256xf32>
    %62 = arith.maximumf %1, %61 : vector<4x256xf32>
    %c254_i32 = arith.constant 254 : i32
    %63 = tpu.dynamic_rotate %1 by %c254_i32 dim 1 : vector<4x256xf32>, i32 -> vector<4x256xf32>
    %64 = vector.broadcast %28 : vector<1x256xf32> to vector<4x256xf32>
    %65 = arith.addf %63, %64 : vector<4x256xf32>
    %66 = arith.maximumf %62, %65 : vector<4x256xf32>
    %c1_i32_22 = arith.constant 1 : i32
    %67 = tpu.dynamic_rotate %1 by %c1_i32_22 dim 1 : vector<4x256xf32>, i32 -> vector<4x256xf32>
    %68 = vector.broadcast %33 : vector<1x256xf32> to vector<4x256xf32>
    %69 = arith.addf %67, %68 : vector<4x256xf32>
    %70 = arith.maximumf %66, %69 : vector<4x256xf32>
    %c2_i32_23 = arith.constant 2 : i32
    %71 = tpu.dynamic_rotate %1 by %c2_i32_23 dim 1 : vector<4x256xf32>, i32 -> vector<4x256xf32>
    %72 = vector.broadcast %38 : vector<1x256xf32> to vector<4x256xf32>
    %73 = arith.addf %71, %72 : vector<4x256xf32>
    %74 = arith.maximumf %70, %73 : vector<4x256xf32>
    %c240_i32_24 = arith.constant 240 : i32
    %75 = tpu.dynamic_rotate %74 by %c240_i32_24 dim 1 : vector<4x256xf32>, i32 -> vector<4x256xf32>
    %76 = vector.broadcast %43 : vector<1x256xf32> to vector<4x256xf32>
    %77 = arith.addf %75, %76 : vector<4x256xf32>
    %78 = arith.maximumf %74, %77 : vector<4x256xf32>
    %c224_i32_25 = arith.constant 224 : i32
    %79 = tpu.dynamic_rotate %74 by %c224_i32_25 dim 1 : vector<4x256xf32>, i32 -> vector<4x256xf32>
    %80 = vector.broadcast %48 : vector<1x256xf32> to vector<4x256xf32>
    %81 = arith.addf %79, %80 : vector<4x256xf32>
    %82 = arith.maximumf %78, %81 : vector<4x256xf32>
    %c16_i32_26 = arith.constant 16 : i32
    %83 = tpu.dynamic_rotate %74 by %c16_i32_26 dim 1 : vector<4x256xf32>, i32 -> vector<4x256xf32>
    %84 = vector.broadcast %53 : vector<1x256xf32> to vector<4x256xf32>
    %85 = arith.addf %83, %84 : vector<4x256xf32>
    %86 = arith.maximumf %82, %85 : vector<4x256xf32>
    %c32_i32_27 = arith.constant 32 : i32
    %87 = tpu.dynamic_rotate %74 by %c32_i32_27 dim 1 : vector<4x256xf32>, i32 -> vector<4x256xf32>
    %88 = vector.broadcast %58 : vector<1x256xf32> to vector<4x256xf32>
    %89 = arith.addf %87, %88 : vector<4x256xf32>
    %90 = arith.maximumf %86, %89 : vector<4x256xf32>
    %c255_i32_28 = arith.constant 255 : i32
    %91 = tpu.dynamic_rotate %90 by %c255_i32_28 dim 1 : vector<4x256xf32>, i32 -> vector<4x256xf32>
    %92 = vector.broadcast %23 : vector<1x256xf32> to vector<4x256xf32>
    %93 = arith.addf %91, %92 : vector<4x256xf32>
    %94 = arith.maximumf %90, %93 : vector<4x256xf32>
    %c254_i32_29 = arith.constant 254 : i32
    %95 = tpu.dynamic_rotate %90 by %c254_i32_29 dim 1 : vector<4x256xf32>, i32 -> vector<4x256xf32>
    %96 = vector.broadcast %28 : vector<1x256xf32> to vector<4x256xf32>
    %97 = arith.addf %95, %96 : vector<4x256xf32>
    %98 = arith.maximumf %94, %97 : vector<4x256xf32>
    %c1_i32_30 = arith.constant 1 : i32
    %99 = tpu.dynamic_rotate %90 by %c1_i32_30 dim 1 : vector<4x256xf32>, i32 -> vector<4x256xf32>
    %100 = vector.broadcast %33 : vector<1x256xf32> to vector<4x256xf32>
    %101 = arith.addf %99, %100 : vector<4x256xf32>
    %102 = arith.maximumf %98, %101 : vector<4x256xf32>
    %c2_i32_31 = arith.constant 2 : i32
    %103 = tpu.dynamic_rotate %90 by %c2_i32_31 dim 1 : vector<4x256xf32>, i32 -> vector<4x256xf32>
    %104 = vector.broadcast %38 : vector<1x256xf32> to vector<4x256xf32>
    %105 = arith.addf %103, %104 : vector<4x256xf32>
    %106 = arith.maximumf %102, %105 : vector<4x256xf32>
    %c240_i32_32 = arith.constant 240 : i32
    %107 = tpu.dynamic_rotate %106 by %c240_i32_32 dim 1 : vector<4x256xf32>, i32 -> vector<4x256xf32>
    %108 = vector.broadcast %43 : vector<1x256xf32> to vector<4x256xf32>
    %109 = arith.addf %107, %108 : vector<4x256xf32>
    %110 = arith.maximumf %106, %109 : vector<4x256xf32>
    %c224_i32_33 = arith.constant 224 : i32
    %111 = tpu.dynamic_rotate %106 by %c224_i32_33 dim 1 : vector<4x256xf32>, i32 -> vector<4x256xf32>
    %112 = vector.broadcast %48 : vector<1x256xf32> to vector<4x256xf32>
    %113 = arith.addf %111, %112 : vector<4x256xf32>
    %114 = arith.maximumf %110, %113 : vector<4x256xf32>
    %c16_i32_34 = arith.constant 16 : i32
    %115 = tpu.dynamic_rotate %106 by %c16_i32_34 dim 1 : vector<4x256xf32>, i32 -> vector<4x256xf32>
    %116 = vector.broadcast %53 : vector<1x256xf32> to vector<4x256xf32>
    %117 = arith.addf %115, %116 : vector<4x256xf32>
    %118 = arith.maximumf %114, %117 : vector<4x256xf32>
    %c32_i32_35 = arith.constant 32 : i32
    %119 = tpu.dynamic_rotate %106 by %c32_i32_35 dim 1 : vector<4x256xf32>, i32 -> vector<4x256xf32>
    %120 = vector.broadcast %58 : vector<1x256xf32> to vector<4x256xf32>
    %121 = arith.addf %119, %120 : vector<4x256xf32>
    %122 = arith.maximumf %118, %121 : vector<4x256xf32>
    %c255_i32_36 = arith.constant 255 : i32
    %123 = tpu.dynamic_rotate %122 by %c255_i32_36 dim 1 : vector<4x256xf32>, i32 -> vector<4x256xf32>
    %124 = vector.broadcast %23 : vector<1x256xf32> to vector<4x256xf32>
    %125 = arith.addf %123, %124 : vector<4x256xf32>
    %126 = arith.maximumf %122, %125 : vector<4x256xf32>
    %c254_i32_37 = arith.constant 254 : i32
    %127 = tpu.dynamic_rotate %122 by %c254_i32_37 dim 1 : vector<4x256xf32>, i32 -> vector<4x256xf32>
    %128 = vector.broadcast %28 : vector<1x256xf32> to vector<4x256xf32>
    %129 = arith.addf %127, %128 : vector<4x256xf32>
    %130 = arith.maximumf %126, %129 : vector<4x256xf32>
    %c1_i32_38 = arith.constant 1 : i32
    %131 = tpu.dynamic_rotate %122 by %c1_i32_38 dim 1 : vector<4x256xf32>, i32 -> vector<4x256xf32>
    %132 = vector.broadcast %33 : vector<1x256xf32> to vector<4x256xf32>
    %133 = arith.addf %131, %132 : vector<4x256xf32>
    %134 = arith.maximumf %130, %133 : vector<4x256xf32>
    %c2_i32_39 = arith.constant 2 : i32
    %135 = tpu.dynamic_rotate %122 by %c2_i32_39 dim 1 : vector<4x256xf32>, i32 -> vector<4x256xf32>
    %136 = vector.broadcast %38 : vector<1x256xf32> to vector<4x256xf32>
    %137 = arith.addf %135, %136 : vector<4x256xf32>
    %138 = arith.maximumf %134, %137 : vector<4x256xf32>
    %c240_i32_40 = arith.constant 240 : i32
    %139 = tpu.dynamic_rotate %138 by %c240_i32_40 dim 1 : vector<4x256xf32>, i32 -> vector<4x256xf32>
    %140 = vector.broadcast %43 : vector<1x256xf32> to vector<4x256xf32>
    %141 = arith.addf %139, %140 : vector<4x256xf32>
    %142 = arith.maximumf %138, %141 : vector<4x256xf32>
    %c224_i32_41 = arith.constant 224 : i32
    %143 = tpu.dynamic_rotate %138 by %c224_i32_41 dim 1 : vector<4x256xf32>, i32 -> vector<4x256xf32>
    %144 = vector.broadcast %48 : vector<1x256xf32> to vector<4x256xf32>
    %145 = arith.addf %143, %144 : vector<4x256xf32>
    %146 = arith.maximumf %142, %145 : vector<4x256xf32>
    %c16_i32_42 = arith.constant 16 : i32
    %147 = tpu.dynamic_rotate %138 by %c16_i32_42 dim 1 : vector<4x256xf32>, i32 -> vector<4x256xf32>
    %148 = vector.broadcast %53 : vector<1x256xf32> to vector<4x256xf32>
    %149 = arith.addf %147, %148 : vector<4x256xf32>
    %150 = arith.maximumf %146, %149 : vector<4x256xf32>
    %c32_i32_43 = arith.constant 32 : i32
    %151 = tpu.dynamic_rotate %138 by %c32_i32_43 dim 1 : vector<4x256xf32>, i32 -> vector<4x256xf32>
    %152 = vector.broadcast %58 : vector<1x256xf32> to vector<4x256xf32>
    %153 = arith.addf %151, %152 : vector<4x256xf32>
    %154 = arith.maximumf %150, %153 : vector<4x256xf32>
    %c0_44 = arith.constant 0 : index
    %c0_45 = arith.constant 0 : index
    %c0_46 = arith.constant 0 : index
    %c0_47 = arith.constant 0 : index
    %155 = vector.load %arg3[%c0_44, %c0_45, %c0_46, %c0_47] : memref<1x4x4x256xf32, #tpu.memory_space<vmem>>, vector<1x1x4x256xf32>
    %156 = vector.shape_cast %155 : vector<1x1x4x256xf32> to vector<4x256xf32>
    %157 = vector.shape_cast %154 : vector<4x256xf32> to vector<1x1x4x256xf32>
    tpu.vector_store %arg3[%c0_44, %c0_45, %c0_46, %c0_47], %157 {strides = array<i32>} : memref<1x4x4x256xf32, #tpu.memory_space<vmem>>, vector<1x1x4x256xf32>,
    %c0_48 = arith.constant 0 : index
    %c1 = arith.constant 1 : index
    %c0_49 = arith.constant 0 : index
    %c0_50 = arith.constant 0 : index
    %158 = vector.load %arg3[%c0_48, %c1, %c0_49, %c0_50] : memref<1x4x4x256xf32, #tpu.memory_space<vmem>>, vector<1x1x4x256xf32>
    %159 = vector.shape_cast %158 : vector<1x1x4x256xf32> to vector<4x256xf32>
    %160 = vector.shape_cast %122 : vector<4x256xf32> to vector<1x1x4x256xf32>
    tpu.vector_store %arg3[%c0_48, %c1, %c0_49, %c0_50], %160 {strides = array<i32>} : memref<1x4x4x256xf32, #tpu.memory_space<vmem>>, vector<1x1x4x256xf32>,
    %c0_51 = arith.constant 0 : index
    %c2 = arith.constant 2 : index
    %c0_52 = arith.constant 0 : index
    %c0_53 = arith.constant 0 : index
    %161 = vector.load %arg3[%c0_51, %c2, %c0_52, %c0_53] : memref<1x4x4x256xf32, #tpu.memory_space<vmem>>, vector<1x1x4x256xf32>
    %162 = vector.shape_cast %161 : vector<1x1x4x256xf32> to vector<4x256xf32>
    %163 = vector.shape_cast %90 : vector<4x256xf32> to vector<1x1x4x256xf32>
    tpu.vector_store %arg3[%c0_51, %c2, %c0_52, %c0_53], %163 {strides = array<i32>} : memref<1x4x4x256xf32, #tpu.memory_space<vmem>>, vector<1x1x4x256xf32>,
    %c0_54 = arith.constant 0 : index
    %c3 = arith.constant 3 : index
    %c0_55 = arith.constant 0 : index
    %c0_56 = arith.constant 0 : index
    %164 = vector.load %arg3[%c0_54, %c3, %c0_55, %c0_56] : memref<1x4x4x256xf32, #tpu.memory_space<vmem>>, vector<1x1x4x256xf32>
    %165 = vector.shape_cast %164 : vector<1x1x4x256xf32> to vector<4x256xf32>
    %166 = vector.shape_cast %1 : vector<4x256xf32> to vector<1x1x4x256xf32>
    tpu.vector_store %arg3[%c0_54, %c3, %c0_55, %c0_56], %166 {strides = array<i32>} : memref<1x4x4x256xf32, #tpu.memory_space<vmem>>, vector<1x1x4x256xf32>,
    return
  }
  func.func @transform_0(%arg0: i32, %arg1: i32) -> (i32, i32, i32) {
    %c0_i32 = arith.constant 0 : i32
    %c0_i32_0 = arith.constant 0 : i32
    return %arg0, %arg1, %c0_i32 : i32, i32, i32
  }
  func.func @transform_1(%arg0: i32, %arg1: i32) -> (i32, i32, i32, i32) {
    %c0_i32 = arith.constant 0 : i32
    %c0_i32_0 = arith.constant 0 : i32
    %c0_i32_1 = arith.constant 0 : i32
    return %arg0, %c0_i32, %arg1, %c0_i32_0 : i32, i32, i32, i32
  }
}

</mosaic_0001>

<llo_original>
// kernel: spatial_pyramid_pooling.1
$region0: #{spatial_pyramid_pooling.1}
  #allocation0 [shape = 'u32[]', space=smem, size = 0x4, offset = 0x4, fixed_abs, tag = 'smem constant byte address 0x4 - core index']
  #allocation1 [shape = 'u32[144,128]{1,0:T(1,128)}', space=vmem, size = 0x12000, scoped, tag = 'internal scratch']
  %s0 = inlined_call_operand.vmem [shape: f32[2,4,256], index: 0, kind: input, shape index: {}]
  %s1 = inlined_call_operand.vmem [shape: f32[2,4,4,256], index: 1, kind: output, shape index: {}]
  %s2 = sld [smem:[#allocation0]]
  $region37: #{spatial_pyramid_pooling.1} parent=0
    _
  %s4 = ssub.s32 1, %s2
  %s5 = scalar_select 0, %s4, %s2
  loop: start=0, step=1, limit=4
  $region2: #{spatial_pyramid_pooling.1} parent=0 // loop_pre_header
    _
  $region3: #{spatial_pyramid_pooling.1} parent=0 // loop_header
    %s7 = sphi 0, %s11
    %p8 = scmp.ge.s32.totalorder %s7, 4
    %s14 = sphi 0, %s26
    %s15 = sphi 0, %s22
    %s16 = sphi 0, %s14
    %s17 = sphi 0, %s15
    %s18 = sphi 0, %s16
    %s19 = sphi 0, %s17
    %s31 = sphi 0, %s33
    %s34 = sphi 0, %s31
    %s35 = sphi 0, %s34
    %s51 = sphi 0, %s35
    %s59 = sphi 0, %s61
    %s62 = sphi 0, %s59
    %s63 = sphi 0, %s62
    %s79 = sphi 0, %s63
  $region4: #{spatial_pyramid_pooling.1} parent=0 // loop_header_branch
    %10 = sbr.rel (%p8) target = $region8
  $region5: #{spatial_pyramid_pooling.1} parent=0 // loop_body
    %s12 = ssub.s32 %s7, 1
    %s13 = ssub.s32 %s7, 2
    %s20 = sadd.s32 1, %s15
    %p21 = scmp.ge.s32.totalorder %s20, 1
    %s22 = scalar_select %p21, 0, %s20
    %s23 = sadd.s32 1, %s14
    %s24 = scalar_select %p21, %s23, %s14
    %p25 = scmp.ge.s32.totalorder %s24, 2
    %s26 = scalar_select %p25, 0, %s24
    %s27 = ssub.s32 %s14, %s26
    %s28 = ssub.s32 %s15, %s22
    %s29 = sor.u32 %s27, %s28
    %p30 = scmp.eq.s32.totalorder %s29, 0
    %s32 = sadd.s32 %s31, 1
    %s33 = scalar_select %p30, %s31, %s32
    %p36 = pneg %p30
    %p37 = scmp.eq.s32.totalorder %s7, 1
    %p38 = por %p36, %p37
    %p39 = scmp.ne.s32.totalorder %s31, %s34
    %p40 = scmp.eq.s32.totalorder %s7, 0
    %p41 = por %p39, %p40
    %p42 = scmp.ne.s32.totalorder %s31, %s34
    %p43 = scmp.eq.s32.totalorder %s12, 1
    %p44 = por %p42, %p43
    %p45 = scmp.ne.s32.totalorder %s34, %s35
    %p46 = scmp.eq.s32.totalorder %s12, 0
    %p47 = por %p45, %p46
    %p48 = scmp.ne.s32.totalorder %s34, %s35
    %p49 = scmp.eq.s32.totalorder %s13, 1
    %p50 = por %p48, %p49
    %p52 = scmp.ne.s32.totalorder %s35, %s51
    %p53 = scmp.eq.s32.totalorder %s13, 0
    %p54 = por %p52, %p53
    %s55 = ssub.s32 %s14, %s26
    %s56 = ssub.s32 %s15, %s22
    %s57 = sor.u32 %s55, %s56
    %p58 = scmp.eq.s32.totalorder %s57, 0
    %s60 = sadd.s32 %s59, 1
    %s61 = scalar_select %p58, %s59, %s60
    %p64 = pneg %p58
    %p65 = scmp.eq.s32.totalorder %s7, 1
    %p66 = por %p64, %p65
    %p67 = scmp.ne.s32.totalorder %s59, %s62
    %p68 = scmp.eq.s32.totalorder %s7, 0
    %p69 = por %p67, %p68
    %p70 = scmp.ne.s32.totalorder %s59, %s62
    %p71 = scmp.eq.s32.totalorder %s12, 1
    %p72 = por %p70, %p71
    %p73 = scmp.ne.s32.totalorder %s62, %s63
    %p74 = scmp.eq.s32.totalorder %s12, 0
    %p75 = por %p73, %p74
    %p76 = scmp.ne.s32.totalorder %s62, %s63
    %p77 = scmp.eq.s32.totalorder %s13, 1
    %p78 = por %p76, %p77
    %p80 = scmp.ne.s32.totalorder %s63, %s79
    %p81 = scmp.eq.s32.totalorder %s13, 0
    %p82 = por %p80, %p81
    %p83 = scmp.le.s32.totalorder 1, %s7
    %p84 = scmp.lt.s32.totalorder %s7, 3
    %p85 = pnand %p83, %p84
    %p86 = pneg %p85
    // Predicated region
    $region9: #{spatial_pyramid_pooling.1} parent=5 // pred_check
      _
    $region10: #{spatial_pyramid_pooling.1} parent=5 // pred_check_branch
      %88 = sbr.rel (%p85) target = $region12
    $region11: #{spatial_pyramid_pooling.1} parent=5 // pred_region
      %s89 = ssub.s32 %s7, 1
    $region12: #{spatial_pyramid_pooling.1} parent=5 // pred_fallthru
      _
    %p90 = scmp.lt.s32.totalorder %s7, 2
    // Predicated region
    $region13: #{spatial_pyramid_pooling.1} parent=5 // pred_check
      %p91 = pneg %p90
    $region14: #{spatial_pyramid_pooling.1} parent=5 // pred_check_branch
      %93 = sbr.rel (%p91) target = $region16
    $region15: #{spatial_pyramid_pooling.1} parent=5 // pred_region
      // Predicated region
      $region17: #{spatial_pyramid_pooling.1} parent=15 // pred_check
        %p94 = pneg %p41
      $region18: #{spatial_pyramid_pooling.1} parent=15 // pred_check_branch
        %96 = sbr.rel (%p94) target = $region20
      $region19: #{spatial_pyramid_pooling.1} parent=15 // pred_region
        %p97 = scmp.lt.s32.totalorder %s14, 1
        %s98 = scalar_select %p97, %s14, 1
        %p99 = scmp.lt.s32.totalorder %s15, 0
        %s100 = scalar_select %p99, %s15, 0
        %s101 = smul.addr %s100, 2
        %s102 = smul.addr %s98, 2
        %s103 = sadd.s32 %s101, %s102
        %s104 = smul.addr %s103, 4
        %s105 = scalar_lea.vmem %s0, %s104
      $region20: #{spatial_pyramid_pooling.1} parent=15 // pred_fallthru
        _
    $region16: #{spatial_pyramid_pooling.1} parent=5 // pred_fallthru
      _
    %p106 = scmp.le.s32.totalorder 1, %s7
    %p107 = scmp.lt.s32.totalorder %s7, 3
    %p108 = pnand %p106, %p107
    %p109 = pneg %p108
    // Predicated region
    $region21: #{spatial_pyramid_pooling.1} parent=5 // pred_check
      _
    $region22: #{spatial_pyramid_pooling.1} parent=5 // pred_check_branch
      %111 = sbr.rel (%p108) target = $region24
    $region23: #{spatial_pyramid_pooling.1} parent=5 // pred_region
      %s112 = ssub.s32 %s7, 1
      %p113 = scmp.lt.s32.totalorder %s16, 1
      %s114 = scalar_select %p113, %s16, 1
      %p115 = scmp.lt.s32.totalorder %s17, 0
      %s116 = scalar_select %p115, %s17, 0
      %s117 = smul.addr %s116, 2
      %s118 = smul.addr %s114, 2
      %s119 = sadd.s32 %s117, %s118
      %s120 = smul.addr %s119, 4
      %s121 = scalar_lea.vmem %s0, %s120
      %p122 = pneg %p47
      %p123 = pneg %p44
      %p124 = pneg %p75
      %p125 = pneg %p72
      %p126 = scmp.lt.s32.totalorder %s16, 1
      %s127 = scalar_select %p126, %s16, 1
      %p128 = scmp.lt.s32.totalorder %s17, 0
      %s129 = scalar_select %p128, %s17, 0
      %s130 = smul.addr %s129, 2
      %s131 = smul.addr %s127, 8
      %s132 = sadd.s32 %s130, %s131
      %s133 = smul.addr %s132, 4
      %s134 = scalar_lea.vmem %s1, %s133
      %p135 = scmp.lt.s32.totalorder %s16, 1
      %s136 = scalar_select %p135, %s16, 1
      %p137 = scmp.lt.s32.totalorder %s17, 0
      %s138 = scalar_select %p137, %s17, 0
      %s139 = smul.addr %s138, 2
      %s140 = smul.addr %s136, 2
      %s141 = sadd.s32 %s139, %s140
      %s142 = smul.addr %s141, 4
      %s143 = scalar_lea.vmem %s0, %s142
      %p144 = scmp.lt.s32.totalorder %s16, 1
      %s145 = scalar_select %p144, %s16, 1
      %p146 = scmp.lt.s32.totalorder %s17, 0
      %s147 = scalar_select %p146, %s17, 0
      %s148 = smul.addr %s147, 2
      %s149 = smul.addr %s145, 8
      %s150 = sadd.s32 %s148, %s149
      %s151 = smul.addr %s150, 4
      %s152 = scalar_lea.vmem %s1, %s151
      %v153 = vld [vmem:[%s143] sm:$0xff]
      %v154 = vlaneseq
      %v155 = vand.u32 %v154, 127
      %v156 = vadd.s32 %v155, 128
      %vm157 = vcmp.lt.s32.totalorder %v155, 0
      %v158 = vsub.s32 0, %v155
      %v159 = vsel %vm157, %v158, %v155
      %v160 = vshrl.u32 %v159, 4
      %v161 = vand.u32 %v159, 15
      %v162 = vsub.s32 0, %v161
      %v163 = vsel %vm157, %v162, %v161
      %vm164 = vcmp.lt.s32.totalorder %v156, 0
      %v165 = vsub.s32 0, %v156
      %v166 = vsel %vm164, %v165, %v156
      %v167 = vshrl.u32 %v166, 4
      %v168 = vand.u32 %v166, 15
      %v169 = vsub.s32 0, %v168
      %v170 = vsel %vm164, %v169, %v168
      %vm171 = vcmp.ne.s32.totalorder %v163, 0
      %vm172 = vcmp.ne.s32.totalorder %v170, 0
      %vm173 = vcmp.lt.s32.totalorder %v163, 0
      %vm174 = vcmp.lt.s32.totalorder %v170, 0
      %vm175 = vmand %vm173, %vm171
      %vm176 = vmand %vm174, %vm172
      %v177 = vadd.s32 %v163, 16
      %v178 = vadd.s32 %v170, 16
      %v179 = vsel %vm175, %v177, %v163
      %v180 = vsel %vm176, %v178, %v170
      %vm181 = vcmp.lt.s32.totalorder %v179, 15
      %vm182 = vcmp.lt.s32.totalorder %v180, 15
      %v183 = vsel %vm181, 0.0, -inf
      %v184 = vsel %vm182, 0.0, -inf
      %vm185 = vcmp.lt.s32.totalorder %v179, 14
      %vm186 = vcmp.lt.s32.totalorder %v180, 14
      %v187 = vsel %vm185, 0.0, -inf
      %v188 = vsel %vm186, 0.0, -inf
      %vm189 = vcmp.ge.s32.totalorder %v179, 1
      %vm190 = vcmp.ge.s32.totalorder %v180, 1
      %v191 = vsel %vm189, 0.0, -inf
      %v192 = vsel %vm190, 0.0, -inf
      %vm193 = vcmp.ge.s32.totalorder %v179, 2
      %vm194 = vcmp.ge.s32.totalorder %v180, 2
      %v195 = vsel %vm193, 0.0, -inf
      %v196 = vsel %vm194, 0.0, -inf
      %vm197 = vcmp.lt.s32.totalorder %v155, 240
      %vm198 = vcmp.lt.s32.totalorder %v156, 240
      %v199 = vsel %vm197, 0.0, -inf
      %v200 = vsel %vm198, 0.0, -inf
      %vm201 = vcmp.lt.s32.totalorder %v155, 224
      %vm202 = vcmp.lt.s32.totalorder %v156, 224
      %v203 = vsel %vm201, 0.0, -inf
      %v204 = vsel %vm202, 0.0, -inf
      %vm205 = vcmp.ge.s32.totalorder %v155, 16
      %vm206 = vcmp.ge.s32.totalorder %v156, 16
      %v207 = vsel %vm205, 0.0, -inf
      %v208 = vsel %vm206, 0.0, -inf
      %vm209 = vcmp.ge.s32.totalorder %v155, 32
      %vm210 = vcmp.ge.s32.totalorder %v156, 32
      %v211 = vsel %vm209, 0.0, -inf
      %v212 = vsel %vm210, 0.0, -inf
      %v214 = vcombine.high %v153, %v153
      %216 = vrot.lane.b32.xlu0 %v153, 127
      %v217 = vpop.permute.xlu0 %216
      %218 = vrot.lane.b32.xlu0 %v214, 127
      %v219 = vpop.permute.xlu0 %218
      %vm220 = vcmp.lt.s32.totalorder %v155, 127
      %v221 = vsel %vm220, %v217, %v219
      %v222 = vsel %vm220, %v219, %v217
      %v223 = vadd.f32 %v221, %v183
      %v224 = vadd.f32 %v222, %v184
      %v227 = vcombine.low %v223, %v224
      %v229 = vmax.f32 %v153, %v227
      %230 = vrot.lane.b32.xlu0 %v153, 126
      %v231 = vpop.permute.xlu0 %230
      %232 = vrot.lane.b32.xlu0 %v214, 126
      %v233 = vpop.permute.xlu0 %232
      %vm234 = vcmp.lt.s32.totalorder %v155, 126
      %v235 = vsel %vm234, %v231, %v233
      %v236 = vsel %vm234, %v233, %v231
      %v237 = vadd.f32 %v235, %v187
      %v238 = vadd.f32 %v236, %v188
      %v241 = vcombine.low %v237, %v238
      %v243 = vmax.f32 %v229, %v241
      %244 = vrot.lane.b32.xlu0 %v153, 1
      %v245 = vpop.permute.xlu0 %244
      %246 = vrot.lane.b32.xlu0 %v214, 1
      %v247 = vpop.permute.xlu0 %246
      %vm248 = vcmp.lt.s32.totalorder %v155, 1
      %v249 = vsel %vm248, %v245, %v247
      %v250 = vsel %vm248, %v247, %v245
      %v251 = vadd.f32 %v250, %v191
      %v252 = vadd.f32 %v249, %v192
      %v255 = vcombine.low %v251, %v252
      %v257 = vmax.f32 %v243, %v255
      %258 = vrot.lane.b32.xlu0 %v153, 2
      %v259 = vpop.permute.xlu0 %258
      %260 = vrot.lane.b32.xlu0 %v214, 2
      %v261 = vpop.permute.xlu0 %260
      %vm262 = vcmp.lt.s32.totalorder %v155, 2
      %v263 = vsel %vm262, %v259, %v261
      %v264 = vsel %vm262, %v261, %v259
      %v265 = vadd.f32 %v264, %v195
      %v266 = vadd.f32 %v263, %v196
      %v269 = vcombine.low %v265, %v266
      %v271 = vmax.f32 %v257, %v269
      %v273 = vcombine.high %v271, %v271
      %275 = vrot.lane.b32.xlu0 %v271, 112
      %v276 = vpop.permute.xlu0 %275
      %277 = vrot.lane.b32.xlu0 %v273, 112
      %v278 = vpop.permute.xlu0 %277
      %vm279 = vcmp.lt.s32.totalorder %v155, 112
      %v280 = vsel %vm279, %v276, %v278
      %v281 = vsel %vm279, %v278, %v276
      %v282 = vadd.f32 %v280, %v199
      %v283 = vadd.f32 %v281, %v200
      %v286 = vcombine.low %v282, %v283
      %v288 = vmax.f32 %v271, %v286
      %289 = vrot.lane.b32.xlu0 %v271, 96
      %v290 = vpop.permute.xlu0 %289
      %291 = vrot.lane.b32.xlu0 %v273, 96
      %v292 = vpop.permute.xlu0 %291
      %vm293 = vcmp.lt.s32.totalorder %v155, 96
      %v294 = vsel %vm293, %v290, %v292
      %v295 = vsel %vm293, %v292, %v290
      %v296 = vadd.f32 %v294, %v203
      %v297 = vadd.f32 %v295, %v204
      %v300 = vcombine.low %v296, %v297
      %v302 = vmax.f32 %v288, %v300
      %303 = vrot.lane.b32.xlu0 %v271, 16
      %v304 = vpop.permute.xlu0 %303
      %305 = vrot.lane.b32.xlu0 %v273, 16
      %v306 = vpop.permute.xlu0 %305
      %vm307 = vcmp.lt.s32.totalorder %v155, 16
      %v308 = vsel %vm307, %v304, %v306
      %v309 = vsel %vm307, %v306, %v304
      %v310 = vadd.f32 %v309, %v207
      %v311 = vadd.f32 %v308, %v208
      %v314 = vcombine.low %v310, %v311
      %v316 = vmax.f32 %v302, %v314
      %317 = vrot.lane.b32.xlu0 %v271, 32
      %v318 = vpop.permute.xlu0 %317
      %319 = vrot.lane.b32.xlu0 %v273, 32
      %v320 = vpop.permute.xlu0 %319
      %vm321 = vcmp.lt.s32.totalorder %v155, 32
      %v322 = vsel %vm321, %v318, %v320
      %v323 = vsel %vm321, %v320, %v318
      %v324 = vadd.f32 %v323, %v211
      %v325 = vadd.f32 %v322, %v212
      %v328 = vcombine.low %v324, %v325
      %v330 = vmax.f32 %v316, %v328
      %v332 = vcombine.high %v330, %v330
      %334 = vrot.lane.b32.xlu0 %v330, 127
      %v335 = vpop.permute.xlu0 %334
      %336 = vrot.lane.b32.xlu0 %v332, 127
      %v337 = vpop.permute.xlu0 %336
      %v338 = vsel %vm220, %v335, %v337
      %v339 = vsel %vm220, %v337, %v335
      %v340 = vadd.f32 %v338, %v183
      %v341 = vadd.f32 %v339, %v184
      %v344 = vcombine.low %v340, %v341
      %v346 = vmax.f32 %v330, %v344
      %347 = vrot.lane.b32.xlu0 %v330, 126
      %v348 = vpop.permute.xlu0 %347
      %349 = vrot.lane.b32.xlu0 %v332, 126
      %v350 = vpop.permute.xlu0 %349
      %v351 = vsel %vm234, %v348, %v350
      %v352 = vsel %vm234, %v350, %v348
      %v353 = vadd.f32 %v351, %v187
      %v354 = vadd.f32 %v352, %v188
      %v357 = vcombine.low %v353, %v354
      %v359 = vmax.f32 %v346, %v357
      %360 = vrot.lane.b32.xlu0 %v330, 1
      %v361 = vpop.permute.xlu0 %360
      %362 = vrot.lane.b32.xlu0 %v332, 1
      %v363 = vpop.permute.xlu0 %362
      %v364 = vsel %vm248, %v361, %v363
      %v365 = vsel %vm248, %v363, %v361
      %v366 = vadd.f32 %v365, %v191
      %v367 = vadd.f32 %v364, %v192
      %v370 = vcombine.low %v366, %v367
      %v372 = vmax.f32 %v359, %v370
      %373 = vrot.lane.b32.xlu0 %v330, 2
      %v374 = vpop.permute.xlu0 %373
      %375 = vrot.lane.b32.xlu0 %v332, 2
      %v376 = vpop.permute.xlu0 %375
      %v377 = vsel %vm262, %v374, %v376
      %v378 = vsel %vm262, %v376, %v374
      %v379 = vadd.f32 %v378, %v195
      %v380 = vadd.f32 %v377, %v196
      %v383 = vcombine.low %v379, %v380
      %v385 = vmax.f32 %v372, %v383
      %v387 = vcombine.high %v385, %v385
      %389 = vrot.lane.b32.xlu0 %v385, 112
      %v390 = vpop.permute.xlu0 %389
      %391 = vrot.lane.b32.xlu0 %v387, 112
      %v392 = vpop.permute.xlu0 %391
      %v393 = vsel %vm279, %v390, %v392
      %v394 = vsel %vm279, %v392, %v390
      %v395 = vadd.f32 %v393, %v199
      %v396 = vadd.f32 %v394, %v200
      %v399 = vcombine.low %v395, %v396
      %v401 = vmax.f32 %v385, %v399
      %402 = vrot.lane.b32.xlu0 %v385, 96
      %v403 = vpop.permute.xlu0 %402
      %404 = vrot.lane.b32.xlu0 %v387, 96
      %v405 = vpop.permute.xlu0 %404
      %v406 = vsel %vm293, %v403, %v405
      %v407 = vsel %vm293, %v405, %v403
      %v408 = vadd.f32 %v406, %v203
      %v409 = vadd.f32 %v407, %v204
      %v412 = vcombine.low %v408, %v409
      %v414 = vmax.f32 %v401, %v412
      %415 = vrot.lane.b32.xlu0 %v385, 16
      %v416 = vpop.permute.xlu0 %415
      %417 = vrot.lane.b32.xlu0 %v387, 16
      %v418 = vpop.permute.xlu0 %417
      %v419 = vsel %vm307, %v416, %v418
      %v420 = vsel %vm307, %v418, %v416
      %v421 = vadd.f32 %v420, %v207
      %v422 = vadd.f32 %v419, %v208
      %v425 = vcombine.low %v421, %v422
      %v427 = vmax.f32 %v414, %v425
      %428 = vrot.lane.b32.xlu0 %v385, 32
      %v429 = vpop.permute.xlu0 %428
      %430 = vrot.lane.b32.xlu0 %v387, 32
      %v431 = vpop.permute.xlu0 %430
      %v432 = vsel %vm321, %v429, %v431
      %v433 = vsel %vm321, %v431, %v429
      %v434 = vadd.f32 %v433, %v211
      %v435 = vadd.f32 %v432, %v212
      %v438 = vcombine.low %v434, %v435
      %v440 = vmax.f32 %v427, %v438
      %v442 = vcombine.high %v440, %v440
      %444 = vrot.lane.b32.xlu0 %v440, 127
      %v445 = vpop.permute.xlu0 %444
      %446 = vrot.lane.b32.xlu0 %v442, 127
      %v447 = vpop.permute.xlu0 %446
      %v448 = vsel %vm220, %v445, %v447
      %v449 = vsel %vm220, %v447, %v445
      %v450 = vadd.f32 %v448, %v183
      %v451 = vadd.f32 %v449, %v184
      %v454 = vcombine.low %v450, %v451
      %v456 = vmax.f32 %v440, %v454
      %457 = vrot.lane.b32.xlu0 %v440, 126
      %v458 = vpop.permute.xlu0 %457
      %459 = vrot.lane.b32.xlu0 %v442, 126
      %v460 = vpop.permute.xlu0 %459
      %v461 = vsel %vm234, %v458, %v460
      %v462 = vsel %vm234, %v460, %v458
      %v463 = vadd.f32 %v461, %v187
      %v464 = vadd.f32 %v462, %v188
      %v467 = vcombine.low %v463, %v464
      %v469 = vmax.f32 %v456, %v467
      %470 = vrot.lane.b32.xlu0 %v440, 1
      %v471 = vpop.permute.xlu0 %470
      %472 = vrot.lane.b32.xlu0 %v442, 1
      %v473 = vpop.permute.xlu0 %472
      %v474 = vsel %vm248, %v471, %v473
      %v475 = vsel %vm248, %v473, %v471
      %v476 = vadd.f32 %v475, %v191
      %v477 = vadd.f32 %v474, %v192
      %v480 = vcombine.low %v476, %v477
      %v482 = vmax.f32 %v469, %v480
      %483 = vrot.lane.b32.xlu0 %v440, 2
      %v484 = vpop.permute.xlu0 %483
      %485 = vrot.lane.b32.xlu0 %v442, 2
      %v486 = vpop.permute.xlu0 %485
      %v487 = vsel %vm262, %v484, %v486
      %v488 = vsel %vm262, %v486, %v484
      %v489 = vadd.f32 %v488, %v195
      %v490 = vadd.f32 %v487, %v196
      %v493 = vcombine.low %v489, %v490
      %v495 = vmax.f32 %v482, %v493
      %v497 = vcombine.high %v495, %v495
      %499 = vrot.lane.b32.xlu0 %v495, 112
      %v500 = vpop.permute.xlu0 %499
      %501 = vrot.lane.b32.xlu0 %v497, 112
      %v502 = vpop.permute.xlu0 %501
      %v503 = vsel %vm279, %v500, %v502
      %v504 = vsel %vm279, %v502, %v500
      %v505 = vadd.f32 %v503, %v199
      %v506 = vadd.f32 %v504, %v200
      %v509 = vcombine.low %v505, %v506
      %v511 = vmax.f32 %v495, %v509
      %512 = vrot.lane.b32.xlu0 %v495, 96
      %v513 = vpop.permute.xlu0 %512
      %514 = vrot.lane.b32.xlu0 %v497, 96
      %v515 = vpop.permute.xlu0 %514
      %v516 = vsel %vm293, %v513, %v515
      %v517 = vsel %vm293, %v515, %v513
      %v518 = vadd.f32 %v516, %v203
      %v519 = vadd.f32 %v517, %v204
      %v522 = vcombine.low %v518, %v519
      %v524 = vmax.f32 %v511, %v522
      %525 = vrot.lane.b32.xlu0 %v495, 16
      %v526 = vpop.permute.xlu0 %525
      %527 = vrot.lane.b32.xlu0 %v497, 16
      %v528 = vpop.permute.xlu0 %527
      %v529 = vsel %vm307, %v526, %v528
      %v530 = vsel %vm307, %v528, %v526
      %v531 = vadd.f32 %v530, %v207
      %v532 = vadd.f32 %v529, %v208
      %v535 = vcombine.low %v531, %v532
      %v537 = vmax.f32 %v524, %v535
      %538 = vrot.lane.b32.xlu0 %v495, 32
      %v539 = vpop.permute.xlu0 %538
      %540 = vrot.lane.b32.xlu0 %v497, 32
      %v541 = vpop.permute.xlu0 %540
      %v542 = vsel %vm321, %v539, %v541
      %v543 = vsel %vm321, %v541, %v539
      %v544 = vadd.f32 %v543, %v211
      %v545 = vadd.f32 %v542, %v212
      %v548 = vcombine.low %v544, %v545
      %v550 = vmax.f32 %v537, %v548
      %551 = vst [vmem:[%s152] sm:$0xff] %v550
      %s552 = scalar_lea.vmem %s152, 8
      %553 = vst [vmem:[%s552] sm:$0xff] %v440
      %s554 = scalar_lea.vmem %s152, 16
      %555 = vst [vmem:[%s554] sm:$0xff] %v330
      %s556 = scalar_lea.vmem %s152, 24
      %557 = vst [vmem:[%s556] sm:$0xff] %v153
      %p558 = scmp.lt.s32.totalorder %s16, 1
      %s559 = scalar_select %p558, %s16, 1
      %p560 = scmp.lt.s32.totalorder %s17, 0
      %s561 = scalar_select %p560, %s17, 0
      %s562 = smul.addr %s561, 2
      %s563 = smul.addr %s559, 8
      %s564 = sadd.s32 %s562, %s563
      %s565 = smul.addr %s564, 4
      %s566 = scalar_lea.vmem %s1, %s565
      // Predicated region
      $region25: #{spatial_pyramid_pooling.1} parent=23 // pred_check
        %p567 = pneg %p72
      $region26: #{spatial_pyramid_pooling.1} parent=23 // pred_check_branch
        %569 = sbr.rel (%p567) target = $region28
      $region27: #{spatial_pyramid_pooling.1} parent=23 // pred_region
        _
      $region28: #{spatial_pyramid_pooling.1} parent=23 // pred_fallthru
        _
    $region24: #{spatial_pyramid_pooling.1} parent=5 // pred_fallthru
      _
    %p570 = scmp.le.s32.totalorder 2, %s7
    // Predicated region
    $region29: #{spatial_pyramid_pooling.1} parent=5 // pred_check
      %p571 = pneg %p570
    $region30: #{spatial_pyramid_pooling.1} parent=5 // pred_check_branch
      %573 = sbr.rel (%p571) target = $region32
    $region31: #{spatial_pyramid_pooling.1} parent=5 // pred_region
      %s574 = ssub.s32 %s7, 2
      // Predicated region
      $region33: #{spatial_pyramid_pooling.1} parent=31 // pred_check
        %p575 = pneg %p78
      $region34: #{spatial_pyramid_pooling.1} parent=31 // pred_check_branch
        %577 = sbr.rel (%p575) target = $region36
      $region35: #{spatial_pyramid_pooling.1} parent=31 // pred_region
        %p578 = scmp.lt.s32.totalorder %s18, 1
        %s579 = scalar_select %p578, %s18, 1
        %p580 = scmp.lt.s32.totalorder %s19, 0
        %s581 = scalar_select %p580, %s19, 0
        %s582 = smul.addr %s581, 2
        %s583 = smul.addr %s579, 8
        %s584 = sadd.s32 %s582, %s583
        %s585 = smul.addr %s584, 4
        %s586 = scalar_lea.vmem %s1, %s585
      $region36: #{spatial_pyramid_pooling.1} parent=31 // pred_fallthru
        _
    $region32: #{spatial_pyramid_pooling.1} parent=5 // pred_fallthru
      _
  $region6: #{spatial_pyramid_pooling.1} parent=0 // loop_footer
    %s11 = sadd.s32 1, %s7
  $region7: #{spatial_pyramid_pooling.1} parent=0 // loop_footer_branch
    %6 = sbr.rel target = $region3
  $region8: #{spatial_pyramid_pooling.1} parent=0 // loop_exit
    _

</llo_original>
